<compile_context>
chip_gen: v5e
topology: v5e:2x2
jax: 0.10.0
libtpu: 0.0.40
codegen_flags: <defaults>
</compile_context>

<pallas_src>
import functools

import jax
import jax.numpy as jnp
from jax.experimental import pallas as pl
from jax.experimental.pallas import tpu as pltpu


def fusion_kernel(q_ref, mem_ref, mask_ref, w1_ref, w2_ref, wq_ref, vec_ref,
                  out_ref, hsum_ref, den_ref, *, use_bf16_matmul=False):
    m = pl.program_id(1)
    last_m = pl.num_programs(1) - 1
    TB, TM, D = mem_ref.shape
    D2 = 2 * D

    f32 = jnp.float32
    mm_dtype = jnp.bfloat16 if use_bf16_matmul else f32

    @pl.when(m == 0)
    def _init():
        hsum_ref[...] = jnp.zeros_like(hsum_ref)
        den_ref[...] = jnp.zeros_like(den_ref)

    # ---- memory_processor layer 1 for this M-tile: one flat 2-D MXU matmul --
    # (the reshape is layout-free because TM % 8 == 0 or TM == M)
    mem2d = mem_ref[...].reshape(TB * TM, D).astype(mm_dtype)
    h = jnp.dot(mem2d, w1_ref[...].astype(mm_dtype),
                preferred_element_type=f32) + vec_ref[0:1, :]        # + b1
    h = jnp.maximum(h, 0.0)                                          # [TB*TM, 2D]

    # ---- masked partial sum over this M-tile, accumulated in f32 ------------
    mask_t = mask_ref[...]                                           # [TB, TM, 1]
    hsum_ref[...] += jnp.sum(h.reshape(TB, TM, D2) * mask_t, axis=1)  # [TB, 2D]
    den_ref[...] += jnp.sum(mask_t, axis=1)                          # [TB, 1]

    # ---- epilogue: query path, second Linear, residual + LayerNorm ----------
    @pl.when(m == last_m)
    def _finalize():
        q = q_ref[...]                                               # [TB, D] f32
        bq = vec_ref[1:2, 0:D]
        b2 = vec_ref[2:3, 0:D]
        gamma = vec_ref[3:4, 0:D]
        beta = vec_ref[4:5, 0:D]

        # query_processor: Linear(D, D) -> ReLU (dropout = identity in eval)
        pq = jnp.dot(q.astype(mm_dtype), wq_ref[...].astype(mm_dtype),
                     preferred_element_type=f32) + bq
        pq = jnp.maximum(pq, 0.0)                                    # [TB, D]

        # memory_processor layer 2 on the reduced [TB, 2D] sum (hoisted by
        # linearity).  Mask normalization is a [TB,1] reciprocal + multiply;
        # the clamp makes all-zero-mask rows return agg == b2 instead of NaN.
        inv = 1.0 / jnp.maximum(den_ref[...], 1e-6)                  # [TB, 1]
        agg = jnp.dot(hsum_ref[...].astype(mm_dtype),
                      w2_ref[...].astype(mm_dtype),
                      preferred_element_type=f32) * inv + b2          # [TB, D]

        # residual fusion + LayerNorm (dropout = identity)
        resid = q + pq + agg
        mean = jnp.mean(resid, axis=-1, keepdims=True)
        var = jnp.mean((resid - mean) ** 2, axis=-1, keepdims=True)
        out = (resid - mean) * jax.lax.rsqrt(var + 1e-5) * gamma + beta
        out_ref[...] = out.astype(out_ref.dtype)


def pack_params(params, *, use_bf16_matmul=False):
    """Pack parameters once, host-side (reused on every forward call).

    Weights are three UNPADDED arrays in the MXU-operand dtype; biases and the
    LayerNorm affine share one sublane-padded [8, 2D] f32 slab.
    """
    w_dtype = jnp.bfloat16 if use_bf16_matmul else jnp.float32
    D = params['wq'].shape[0]
    D2 = 2 * D

    w1 = params['w1'].astype(w_dtype)          # [D, 2D]  memory Linear 1
    w2 = params['w2'].astype(w_dtype)          # [2D, D]  memory Linear 2
    wq = params['wq'].astype(w_dtype)          # [D, D]   query Linear

    vec = jnp.zeros((8, D2), jnp.float32)      # rows: b1 / bq / b2 / gamma / beta
    vec = vec.at[0, :].set(params['b1'].reshape(-1).astype(jnp.float32))
    vec = vec.at[1, 0:D].set(params['bq'].reshape(-1).astype(jnp.float32))
    vec = vec.at[2, 0:D].set(params['b2'].reshape(-1).astype(jnp.float32))
    vec = vec.at[3, 0:D].set(params['gamma'].reshape(-1).astype(jnp.float32))
    vec = vec.at[4, 0:D].set(params['beta'].reshape(-1).astype(jnp.float32))
    return w1, w2, wq, vec


def _pick_tile(n, candidates):
    for c in candidates:
        if n % c == 0:
            return c
    return n


def residual_memory_fusion(query, memories, packed_params, attention_mask=None,
                           *, tb=None, tm=None, use_bf16_matmul=False):
    B, M, D = memories.shape
    assert query.shape == (B, D)
    w1, w2, wq, vec = packed_params

    if attention_mask is None:
        # mean over memories == masked sum with an all-ones mask
        attention_mask = jnp.ones((B, M), jnp.float32)
    # [B, M, 1] so the mask streams with the memories tiles (static slices only)
    mask3 = attention_mask.astype(jnp.float32)[:, :, None]

    if use_bf16_matmul:
        # host-side cast: halves HBM bytes on the dominant (memories) stream
        memories = memories.astype(jnp.bfloat16)

    # Tile sizes: second-to-last block dims must be a multiple of 8 or equal
    # the full dim; last dims are passed whole (lane-dense when D % 128 == 0).
    if tb is None:
        tb = _pick_tile(B, (256, 128, 64, 32, 16, 8)) if B % 8 == 0 else B
    if tm is None:
        tm = _pick_tile(M, (32, 16, 8)) if M % 8 == 0 else M
    assert B % tb == 0 and M % tm == 0, "tile sizes must divide (B, M)"
    assert tb == B or tb % 8 == 0, "tb must equal B or be a multiple of 8"
    assert tm == M or tm % 8 == 0, "tm must equal M or be a multiple of 8"
    grid = (B // tb, M // tm)

    # TODO(synk): pad D to a multiple of 128 in real deployments for lane-dense
    # output stores and bias/LN slab slices (toy D=32 uses masked partial ops).

    kernel = functools.partial(fusion_kernel, use_bf16_matmul=use_bf16_matmul)

    # VMEM footprint estimate (double-buffered streams + resident weights +
    # scratch); only raise the scoped limit when the 32 MiB default is tight.
    mem_isz = 2 if use_bf16_matmul else 4
    w_isz = w1.dtype.itemsize
    est = (2 * tb * tm * D * mem_isz                    # memories tiles
           + 2 * tb * tm * 128 * 4                      # mask tiles (lane-padded)
           + 2 * tb * D * 4                             # query tile
           + 2 * tb * D * 4                             # out tile
           + 2 * (D * 2 * D + 2 * D * D + D * D) * w_isz  # resident weights
           + 2 * 8 * 2 * D * 4                          # bias/LN slab
           + tb * 2 * D * 4 + tb * 128 * 4)             # hsum + denom scratch
    vmem_limit = None if est <= 32 * 2 ** 20 else min(int(est * 1.25), 120 * 2 ** 20)

    return pl.pallas_call(
        kernel,
        out_shape=jax.ShapeDtypeStruct((B, D), query.dtype),
        grid_spec=pltpu.PrefetchScalarGridSpec(
            num_scalar_prefetch=0,
            grid=grid,
            in_specs=[
                pl.BlockSpec((tb, D), lambda i, m: (i, 0)),            # query
                pl.BlockSpec((tb, tm, D), lambda i, m: (i, m, 0)),     # memories
                pl.BlockSpec((tb, tm, 1), lambda i, m: (i, m, 0)),     # mask
                pl.BlockSpec(w1.shape, lambda i, m: (0, 0)),           # w1 (resident)
                pl.BlockSpec(w2.shape, lambda i, m: (0, 0)),           # w2 (resident)
                pl.BlockSpec(wq.shape, lambda i, m: (0, 0)),           # wq (resident)
                pl.BlockSpec(vec.shape, lambda i, m: (0, 0)),          # bias/LN slab
            ],
            out_specs=pl.BlockSpec((tb, D), lambda i, m: (i, 0)),
            scratch_shapes=[
                pltpu.VMEM((tb, 2 * D), jnp.float32),                  # hsum acc
                pltpu.VMEM((tb, 1), jnp.float32),                      # mask denom acc
            ],
        ),
        compiler_params=pltpu.CompilerParams(
            dimension_semantics=("parallel", "arbitrary"),
            vmem_limit_bytes=vmem_limit,
        ),
    )(query, memories, mask3, w1, w2, wq, vec)


def reference_jax(query, memories, params, attention_mask=None):
    """Pure-JAX reference (mirrors the PyTorch forward in eval mode)."""
    pq = jnp.maximum(query @ params['wq'] + params['bq'], 0.0)
    h = jnp.maximum(jnp.einsum('bmd,de->bme', memories, params['w1']) + params['b1'], 0.0)
    pm = jnp.einsum('bme,ed->bmd', h, params['w2']) + params['b2']
    if attention_mask is None:
        agg = jnp.mean(pm, axis=1)
    else:
        agg = jnp.sum(pm * attention_mask[:, :, None], axis=1) / \
              jnp.sum(attention_mask, axis=1, keepdims=True)
    resid = query + pq + agg
    mean = jnp.mean(resid, axis=-1, keepdims=True)
    var = jnp.mean((resid - mean) ** 2, axis=-1, keepdims=True)
    return (resid - mean) * jax.lax.rsqrt(var + 1e-5) * params['gamma'] + params['beta']


if __name__ == "__main__":
    B, M, D = 2, 16, 32  # batch, num_memories, model_dim (toy sizes)

    key = jax.random.PRNGKey(0)
    ks = jax.random.split(key, 8)
    query = jax.random.normal(ks[0], (B, D), jnp.float32)
    memories = jax.random.normal(ks[1], (B, M, D), jnp.float32)

    # Deterministic synthetic parameters (shapes from __init__), stored [in, out].
    params = dict(
        wq=jax.random.normal(ks[2], (D, D), jnp.float32) * 0.1,          # query_processor Linear
        bq=jax.random.normal(ks[3], (1, D), jnp.float32) * 0.1,
        w1=jax.random.normal(ks[4], (D, 2 * D), jnp.float32) * 0.1,      # memory_processor Linear 1
        b1=jax.random.normal(ks[5], (1, 2 * D), jnp.float32) * 0.1,
        w2=jax.random.normal(ks[6], (2 * D, D), jnp.float32) * 0.1,      # memory_processor Linear 2
        b2=jax.random.normal(ks[7], (1, D), jnp.float32) * 0.1,
        gamma=jnp.ones((1, D), jnp.float32),                             # LayerNorm weight
        beta=jnp.zeros((1, D), jnp.float32),                             # LayerNorm bias
    )

    packed = pack_params(params)   # pack once; reused on every forward call

    # f32 path; tm=8 forces 2 steps on the M grid axis so the hsum/denom
    # accumulator init/accumulate/finalize logic is exercised.
    out = residual_memory_fusion(query, memories, packed, tm=8)
    jax.block_until_ready(out)
    ref = reference_jax(query, memories, params)
    assert out.shape == (B, D)
    assert jnp.allclose(out, ref, atol=1e-4, rtol=1e-4), "kernel mismatch (unmasked)"

    # Explicit-mask path.
    mask = (jax.random.uniform(jax.random.PRNGKey(1), (B, M)) > 0.3).astype(jnp.float32)
    mask = mask.at[:, 0].set(1.0)  # keep at least one live memory per row
    out_m = residual_memory_fusion(query, memories, packed, attention_mask=mask, tm=8)
    jax.block_until_ready(out_m)
    ref_m = reference_jax(query, memories, params, attention_mask=mask)
    assert jnp.allclose(out_m, ref_m, atol=1e-4, rtol=1e-4), "kernel mismatch (masked)"

    # bf16 MXU path (recommended default at scale on v6e/v7x) -- looser tolerance.
    packed_bf16 = pack_params(params, use_bf16_matmul=True)
    out_bf = residual_memory_fusion(query, memories, packed_bf16,
                                    attention_mask=mask, use_bf16_matmul=True)
    jax.block_until_ready(out_bf)
    assert jnp.allclose(out_bf, ref_m, atol=1e-1, rtol=1e-1), "kernel mismatch (bf16)"

    print("KERNEL_OK")
</pallas_src>

<mosaic_0001>
module attributes {stable_mosaic.version = 11 : i64} {
  func.func @fusion_kernel(%arg0: i32, %arg1: i32, %arg2: memref<2x32xf32, #tpu.memory_space<vmem>>, %arg3: memref<2x8x32xf32, #tpu.memory_space<vmem>>, %arg4: memref<2x8x1xf32, #tpu.memory_space<vmem>>, %arg5: memref<32x64xf32, #tpu.memory_space<vmem>>, %arg6: memref<64x32xf32, #tpu.memory_space<vmem>>, %arg7: memref<32x32xf32, #tpu.memory_space<vmem>>, %arg8: memref<8x64xf32, #tpu.memory_space<vmem>>, %arg9: memref<2x32xf32, #tpu.memory_space<vmem>>, %arg10: memref<2x64xf32, #tpu.memory_space<vmem>>, %arg11: memref<2x1xf32, #tpu.memory_space<vmem>>) attributes {dimension_semantics = [#tpu.dimension_semantics<parallel>, #tpu.dimension_semantics<arbitrary>], iteration_bounds = array<i64: 1, 2>, scalar_prefetch = 0 : i64, scratch_operands = 2 : i64, tpu.core_type = #tpu.core_type<tc>, window_params = [{transform_indices = @transform_0, window_bounds = array<i64: 2, 32>}, {transform_indices = @transform_1, window_bounds = array<i64: 2, 8, 32>}, {transform_indices = @transform_2, window_bounds = array<i64: 2, 8, 1>}, {pipeline_mode = #tpu.pipeline_mode<synchronous>, transform_indices = @transform_3, window_bounds = array<i64: 32, 64>}, {pipeline_mode = #tpu.pipeline_mode<synchronous>, transform_indices = @transform_4, window_bounds = array<i64: 64, 32>}, {pipeline_mode = #tpu.pipeline_mode<synchronous>, transform_indices = @transform_5, window_bounds = array<i64: 32, 32>}, {pipeline_mode = #tpu.pipeline_mode<synchronous>, transform_indices = @transform_6, window_bounds = array<i64: 8, 64>}, {transform_indices = @transform_7, window_bounds = array<i64: 2, 32>}]} {
    %c0_i32 = arith.constant 0 : i32
    %0 = arith.cmpi eq, %arg1, %c0_i32 : i32
    %1 = arith.extui %0 : i1 to i32
    %c0_i32_0 = arith.constant 0 : i32
    %2 = arith.cmpi ne, %1, %c0_i32_0 : i32
    scf.if %2 {
      %cst_22 = arith.constant 0.000000e+00 : f32
      %27 = vector.broadcast %cst_22 : f32 to vector<2x64xf32>
      %c0_23 = arith.constant 0 : index
      %c0_24 = arith.constant 0 : index
      %28 = vector.load %arg10[%c0_23, %c0_24] : memref<2x64xf32, #tpu.memory_space<vmem>>, vector<2x64xf32>
      tpu.vector_store %arg10[%c0_23, %c0_24], %27 {strides = array<i32>} : memref<2x64xf32, #tpu.memory_space<vmem>>, vector<2x64xf32>,
      %cst_25 = arith.constant 0.000000e+00 : f32
      %29 = vector.broadcast %cst_25 : f32 to vector<2x1xf32>
      %c0_26 = arith.constant 0 : index
      %c0_27 = arith.constant 0 : index
      %30 = vector.load %arg11[%c0_26, %c0_27] : memref<2x1xf32, #tpu.memory_space<vmem>>, vector<2x1xf32>
      tpu.vector_store %arg11[%c0_26, %c0_27], %29 {strides = array<i32>} : memref<2x1xf32, #tpu.memory_space<vmem>>, vector<2x1xf32>,
    } else {
    }
    %c0 = arith.constant 0 : index
    %c0_1 = arith.constant 0 : index
    %c0_2 = arith.constant 0 : index
    %3 = vector.load %arg3[%c0, %c0_1, %c0_2] : memref<2x8x32xf32, #tpu.memory_space<vmem>>, vector<2x8x32xf32>
    %4 = vector.shape_cast %3 : vector<2x8x32xf32> to vector<16x32xf32>
    %c0_3 = arith.constant 0 : index
    %c0_4 = arith.constant 0 : index
    %5 = vector.load %arg5[%c0_3, %c0_4] : memref<32x64xf32, #tpu.memory_space<vmem>>, vector<32x64xf32>
    %cst = arith.constant dense<0.000000e+00> : vector<16x64xf32>
    %6 = tpu.matmul %4, %5, %cst {dimension_numbers = #tpu.dot_dimension_numbers<[1], [0], [0], [1], [0, 0, 1, 1], [], []>} : vector<16x32xf32>, vector<32x64xf32>, vector<16x64xf32> -> vector<16x64xf32>
    %c0_5 = arith.constant 0 : index
    %c0_6 = arith.constant 0 : index
    %7 = vector.load %arg8[%c0_5, %c0_6] : memref<8x64xf32, #tpu.memory_space<vmem>>, vector<1x64xf32>
    %8 = vector.broadcast %7 : vector<1x64xf32> to vector<16x64xf32>
    %9 = arith.addf %6, %8 : vector<16x64xf32>
    %cst_7 = arith.constant 0.000000e+00 : f32
    %10 = vector.broadcast %cst_7 : f32 to vector<16x64xf32>
    %11 = arith.maximumf %9, %10 : vector<16x64xf32>
    %c0_8 = arith.constant 0 : index
    %c0_9 = arith.constant 0 : index
    %c0_10 = arith.constant 0 : index
    %12 = vector.load %arg4[%c0_8, %c0_9, %c0_10] : memref<2x8x1xf32, #tpu.memory_space<vmem>>, vector<2x8x1xf32>
    %c0_11 = arith.constant 0 : index
    %c0_12 = arith.constant 0 : index
    %13 = vector.load %arg10[%c0_11, %c0_12] : memref<2x64xf32, #tpu.memory_space<vmem>>, vector<2x64xf32>
    %14 = vector.shape_cast %11 : vector<16x64xf32> to vector<2x8x64xf32>
    %15 = vector.broadcast %12 : vector<2x8x1xf32> to vector<2x8x64xf32>
    %16 = arith.mulf %14, %15 : vector<2x8x64xf32>
    %cst_13 = arith.constant dense<0.000000e+00> : vector<2x64xf32>
    %17 = vector.multi_reduction <add>, %16, %cst_13 [1] : vector<2x8x64xf32> to vector<2x64xf32>
    %18 = arith.addf %13, %17 : vector<2x64xf32>
    %c0_14 = arith.constant 0 : index
    %c0_15 = arith.constant 0 : index
    %19 = vector.load %arg10[%c0_14, %c0_15] : memref<2x64xf32, #tpu.memory_space<vmem>>, vector<2x64xf32>
    tpu.vector_store %arg10[%c0_14, %c0_15], %18 {strides = array<i32>} : memref<2x64xf32, #tpu.memory_space<vmem>>, vector<2x64xf32>,
    %c0_16 = arith.constant 0 : index
    %c0_17 = arith.constant 0 : index
    %20 = vector.load %arg11[%c0_16, %c0_17] : memref<2x1xf32, #tpu.memory_space<vmem>>, vector<2x1xf32>
    %cst_18 = arith.constant dense<0.000000e+00> : vector<2x1xf32>
    %21 = vector.multi_reduction <add>, %12, %cst_18 [1] : vector<2x8x1xf32> to vector<2x1xf32>
    %22 = arith.addf %20, %21 : vector<2x1xf32>
    %c0_19 = arith.constant 0 : index
    %c0_20 = arith.constant 0 : index
    %23 = vector.load %arg11[%c0_19, %c0_20] : memref<2x1xf32, #tpu.memory_space<vmem>>, vector<2x1xf32>
    tpu.vector_store %arg11[%c0_19, %c0_20], %22 {strides = array<i32>} : memref<2x1xf32, #tpu.memory_space<vmem>>, vector<2x1xf32>,
    %c1_i32 = arith.constant 1 : i32
    %24 = arith.cmpi eq, %arg1, %c1_i32 : i32
    %25 = arith.extui %24 : i1 to i32
    %c0_i32_21 = arith.constant 0 : i32
    %26 = arith.cmpi ne, %25, %c0_i32_21 : i32
    scf.if %26 {
      %c0_22 = arith.constant 0 : index
      %c0_23 = arith.constant 0 : index
      %27 = vector.load %arg2[%c0_22, %c0_23] : memref<2x32xf32, #tpu.memory_space<vmem>>, vector<2x32xf32>
      %c1 = arith.constant 1 : index
      %c0_24 = arith.constant 0 : index
      %28 = vector.load %arg8[%c1, %c0_24] : memref<8x64xf32, #tpu.memory_space<vmem>>, vector<1x32xf32>
      %c2 = arith.constant 2 : index
      %c0_25 = arith.constant 0 : index
      %29 = vector.load %arg8[%c2, %c0_25] : memref<8x64xf32, #tpu.memory_space<vmem>>, vector<1x32xf32>
      %c3 = arith.constant 3 : index
      %c0_26 = arith.constant 0 : index
      %30 = vector.load %arg8[%c3, %c0_26] : memref<8x64xf32, #tpu.memory_space<vmem>>, vector<1x32xf32>
      %c4 = arith.constant 4 : index
      %c0_27 = arith.constant 0 : index
      %31 = vector.load %arg8[%c4, %c0_27] : memref<8x64xf32, #tpu.memory_space<vmem>>, vector<1x32xf32>
      %c0_28 = arith.constant 0 : index
      %c0_29 = arith.constant 0 : index
      %32 = vector.load %arg7[%c0_28, %c0_29] : memref<32x32xf32, #tpu.memory_space<vmem>>, vector<32x32xf32>
      %cst_30 = arith.constant dense<0.000000e+00> : vector<2x32xf32>
      %33 = tpu.matmul %27, %32, %cst_30 {dimension_numbers = #tpu.dot_dimension_numbers<[1], [0], [0], [1], [0, 0, 1, 1], [], []>} : vector<2x32xf32>, vector<32x32xf32>, vector<2x32xf32> -> vector<2x32xf32>
      %34 = vector.broadcast %28 : vector<1x32xf32> to vector<2x32xf32>
      %35 = arith.addf %33, %34 : vector<2x32xf32>
      %cst_31 = arith.constant 0.000000e+00 : f32
      %36 = vector.broadcast %cst_31 : f32 to vector<2x32xf32>
      %37 = arith.maximumf %35, %36 : vector<2x32xf32>
      %c0_32 = arith.constant 0 : index
      %c0_33 = arith.constant 0 : index
      %38 = vector.load %arg11[%c0_32, %c0_33] : memref<2x1xf32, #tpu.memory_space<vmem>>, vector<2x1xf32>
      %cst_34 = arith.constant 9.99999997E-7 : f32
      %39 = vector.broadcast %cst_34 : f32 to vector<2x1xf32>
      %40 = arith.maximumf %38, %39 : vector<2x1xf32>
      %cst_35 = arith.constant 1.000000e+00 : f32
      %41 = vector.broadcast %cst_35 : f32 to vector<2x1xf32>
      %42 = arith.divf %41, %40 : vector<2x1xf32>
      %c0_36 = arith.constant 0 : index
      %c0_37 = arith.constant 0 : index
      %43 = vector.load %arg10[%c0_36, %c0_37] : memref<2x64xf32, #tpu.memory_space<vmem>>, vector<2x64xf32>
      %c0_38 = arith.constant 0 : index
      %c0_39 = arith.constant 0 : index
      %44 = vector.load %arg6[%c0_38, %c0_39] : memref<64x32xf32, #tpu.memory_space<vmem>>, vector<64x32xf32>
      %cst_40 = arith.constant dense<0.000000e+00> : vector<2x32xf32>
      %45 = tpu.matmul %43, %44, %cst_40 {dimension_numbers = #tpu.dot_dimension_numbers<[1], [0], [0], [1], [0, 0, 1, 1], [], []>} : vector<2x64xf32>, vector<64x32xf32>, vector<2x32xf32> -> vector<2x32xf32>
      %46 = vector.broadcast %42 : vector<2x1xf32> to vector<2x32xf32>
      %47 = arith.mulf %45, %46 : vector<2x32xf32>
      %48 = vector.broadcast %29 : vector<1x32xf32> to vector<2x32xf32>
      %49 = arith.addf %47, %48 : vector<2x32xf32>
      %50 = arith.addf %27, %37 : vector<2x32xf32>
      %51 = arith.addf %50, %49 : vector<2x32xf32>
      %cst_41 = arith.constant dense<0.000000e+00> : vector<2xf32>
      %52 = vector.multi_reduction <add>, %51, %cst_41 [1] : vector<2x32xf32> to vector<2xf32>
      %53 = vector.shape_cast %52 : vector<2xf32> to vector<2x1xf32>
      %cst_42 = arith.constant 3.200000e+01 : f32
      %54 = vector.broadcast %cst_42 : f32 to vector<2x1xf32>
      %55 = arith.divf %53, %54 : vector<2x1xf32>
      %56 = vector.broadcast %55 : vector<2x1xf32> to vector<2x32xf32>
      %57 = arith.subf %51, %56 : vector<2x32xf32>
      %58 = arith.mulf %57, %57 : vector<2x32xf32>
      %cst_43 = arith.constant dense<0.000000e+00> : vector<2xf32>
      %59 = vector.multi_reduction <add>, %58, %cst_43 [1] : vector<2x32xf32> to vector<2xf32>
      %60 = vector.shape_cast %59 : vector<2xf32> to vector<2x1xf32>
      %cst_44 = arith.constant 3.200000e+01 : f32
      %61 = vector.broadcast %cst_44 : f32 to vector<2x1xf32>
      %62 = arith.divf %60, %61 : vector<2x1xf32>
      %63 = vector.broadcast %55 : vector<2x1xf32> to vector<2x32xf32>
      %64 = arith.subf %51, %63 : vector<2x32xf32>
      %cst_45 = arith.constant 9.99999974E-6 : f32
      %65 = vector.broadcast %cst_45 : f32 to vector<2x1xf32>
      %66 = arith.addf %62, %65 : vector<2x1xf32>
      %67 = math.rsqrt %66 : vector<2x1xf32>
      %68 = vector.broadcast %67 : vector<2x1xf32> to vector<2x32xf32>
      %69 = arith.mulf %64, %68 : vector<2x32xf32>
      %70 = vector.broadcast %30 : vector<1x32xf32> to vector<2x32xf32>
      %71 = arith.mulf %69, %70 : vector<2x32xf32>
      %72 = vector.broadcast %31 : vector<1x32xf32> to vector<2x32xf32>
      %73 = arith.addf %71, %72 : vector<2x32xf32>
      %c0_46 = arith.constant 0 : index
      %c0_47 = arith.constant 0 : index
      %74 = vector.load %arg9[%c0_46, %c0_47] : memref<2x32xf32, #tpu.memory_space<vmem>>, vector<2x32xf32>
      tpu.vector_store %arg9[%c0_46, %c0_47], %73 {strides = array<i32>} : memref<2x32xf32, #tpu.memory_space<vmem>>, vector<2x32xf32>,
    } else {
    }
    return
  }
  func.func @transform_0(%arg0: i32, %arg1: i32) -> (i32, i32) {
    %c0_i32 = arith.constant 0 : i32
    %c0_i32_0 = arith.constant 0 : i32
    return %arg0, %c0_i32 : i32, i32
  }
  func.func @transform_1(%arg0: i32, %arg1: i32) -> (i32, i32, i32) {
    %c0_i32 = arith.constant 0 : i32
    %c0_i32_0 = arith.constant 0 : i32
    return %arg0, %arg1, %c0_i32 : i32, i32, i32
  }
  func.func @transform_2(%arg0: i32, %arg1: i32) -> (i32, i32, i32) {
    %c0_i32 = arith.constant 0 : i32
    %c0_i32_0 = arith.constant 0 : i32
    return %arg0, %arg1, %c0_i32 : i32, i32, i32
  }
  func.func @transform_3(%arg0: i32, %arg1: i32) -> (i32, i32) {
    %c0_i32 = arith.constant 0 : i32
    %c0_i32_0 = arith.constant 0 : i32
    %c0_i32_1 = arith.constant 0 : i32
    return %c0_i32, %c0_i32_0 : i32, i32
  }
  func.func @transform_4(%arg0: i32, %arg1: i32) -> (i32, i32) {
    %c0_i32 = arith.constant 0 : i32
    %c0_i32_0 = arith.constant 0 : i32
    %c0_i32_1 = arith.constant 0 : i32
    return %c0_i32, %c0_i32_0 : i32, i32
  }
  func.func @transform_5(%arg0: i32, %arg1: i32) -> (i32, i32) {
    %c0_i32 = arith.constant 0 : i32
    %c0_i32_0 = arith.constant 0 : i32
    %c0_i32_1 = arith.constant 0 : i32
    return %c0_i32, %c0_i32_0 : i32, i32
  }
  func.func @transform_6(%arg0: i32, %arg1: i32) -> (i32, i32) {
    %c0_i32 = arith.constant 0 : i32
    %c0_i32_0 = arith.constant 0 : i32
    %c0_i32_1 = arith.constant 0 : i32
    return %c0_i32, %c0_i32_0 : i32, i32
  }
  func.func @transform_7(%arg0: i32, %arg1: i32) -> (i32, i32) {
    %c0_i32 = arith.constant 0 : i32
    %c0_i32_0 = arith.constant 0 : i32
    return %arg0, %c0_i32 : i32, i32
  }
}

</mosaic_0001>

<llo_original>
// kernel: tpu_custom_call.1
$region0: #{tpu_custom_call.1}
  #allocation0 [shape = 'u32[]', space=smem, size = 0x4, offset = 0x4, fixed_abs, tag = 'smem constant byte address 0x4 - core index']
  #allocation1 [shape = 'u32[72,128]{1,0:T(1,128)}', space=vmem, size = 0x9000, scoped, tag = 'internal scratch']
  #allocation2 [shape = 'f32[2,64]{1,0:T(2,128)}', space=vmem, size = 0x400, scoped, tag = 'scratch operand']
  #allocation3 [shape = 'f32[2,1]{1,0:T(2,128)}', space=vmem, size = 0x400, scoped, tag = 'scratch operand']
  %s0 = inlined_call_operand.vmem [shape: f32[2,32], index: 0, kind: input, shape index: {}]
  %s1 = inlined_call_operand.vmem [shape: f32[2,16,32], index: 1, kind: input, shape index: {}]
  %s2 = inlined_call_operand.vmem [shape: f32[2,16,1], index: 2, kind: input, shape index: {}]
  %s3 = inlined_call_operand.vmem [shape: f32[32,64], index: 3, kind: input, shape index: {}]
  %s4 = inlined_call_operand.vmem [shape: f32[64,32], index: 4, kind: input, shape index: {}]
  %s5 = inlined_call_operand.vmem [shape: f32[32,32], index: 5, kind: input, shape index: {}]
  %s6 = inlined_call_operand.hbm [shape: f32[8,64], index: 6, kind: input, shape index: {}]
  %s7 = inlined_call_operand.hbm [shape: f32[2,32], index: 7, kind: output, shape index: {}]
  %s8 = sld [smem:[#allocation0]]
  $region149: #{tpu_custom_call.1} parent=0
    _
  %s10 = ssub.s32 1, %s8
  %s11 = scalar_select 0, %s10, %s8
  $region1: #{tpu_custom_call.1} parent=0
    #allocation4 [shape = 'u8[16384]{0}', space=vmem, size = 0x4000, scoped, tag = 'input window, operand 1']
    #allocation5 [shape = 'u8[16384]{0}', space=vmem, size = 0x4000, scoped, tag = 'input window, operand 2']
    #allocation6 [shape = 'u8[4096]{0}', space=vmem, size = 0x1000, scoped, tag = 'input window, operand 6, single buffered']
    #allocation7 [shape = 's32[2]{0}', space=sflag, size = 0x8, scoped, tag = 'scoped memory for tpu_custom_call.1']
    #allocation8 [shape = 's32[2]{0}', space=sflag, size = 0x8, scoped, tag = 'scoped memory for tpu_custom_call.1']
    #allocation9 [shape = 'u8[1024]{0}', space=vmem, size = 0x400, scoped, tag = 'output window, operand 0, single buffered']
    %12 = vsyncpa [#allocation7], 0
    %13 = vsyncpa [#allocation8], 0
    loop: start=0, step=1, limit=4
    $region2: #{tpu_custom_call.1} parent=1 // loop_pre_header
      _
    $region3: #{tpu_custom_call.1} parent=1 // loop_header
      %s15 = sphi 0, %s19
      %p16 = scmp.ge.s32.totalorder %s15, 4
      %s22 = sphi 0, %s34
      %s23 = sphi 0, %s30
      %s24 = sphi 0, %s22
      %s25 = sphi 0, %s23
      %s26 = sphi 0, %s24
      %s27 = sphi 0, %s25
      %s37 = sphi 0, %s39
      %s40 = sphi 0, %s37
      %s41 = sphi 0, %s40
      %s57 = sphi 0, %s41
      %s65 = sphi 0, %s67
      %s68 = sphi 0, %s65
      %s69 = sphi 0, %s68
      %s85 = sphi 0, %s69
      %s93 = sphi 0, %s95
      %s96 = sphi 0, %s93
      %s97 = sphi 0, %s96
      %s113 = sphi 0, %s97
      %s117 = sphi 0, %s117
      %s119 = sphi 0, %s117
      %s120 = sphi 0, %s119
      %s134 = sphi 0, %s120
      %s138 = sphi 0, %s138
      %s140 = sphi 0, %s138
      %s141 = sphi 0, %s140
      %s155 = sphi 0, %s141
      %s159 = sphi 0, %s159
      %s161 = sphi 0, %s159
      %s162 = sphi 0, %s161
      %s176 = sphi 0, %s162
      %s180 = sphi 0, %s180
      %s182 = sphi 0, %s180
      %s183 = sphi 0, %s182
      %s197 = sphi 0, %s183
      %s203 = sphi 0, %s205
      %s206 = sphi 0, %s203
      %s207 = sphi 0, %s206
      %s223 = sphi 0, %s207
    $region4: #{tpu_custom_call.1} parent=1 // loop_header_branch
      %18 = sbr.rel (%p16) target = $region8
    $region5: #{tpu_custom_call.1} parent=1 // loop_body
      %s20 = ssub.s32 %s15, 1
      %s21 = ssub.s32 %s15, 2
      %s28 = sadd.s32 1, %s23
      %p29 = scmp.ge.s32.totalorder %s28, 2
      %s30 = scalar_select %p29, 0, %s28
      %s31 = sadd.s32 1, %s22
      %s32 = scalar_select %p29, %s31, %s22
      %p33 = scmp.ge.s32.totalorder %s32, 1
      %s34 = scalar_select %p33, 0, %s32
      %s35 = ssub.s32 %s22, %s34
      %p36 = scmp.eq.s32.totalorder %s35, 0
      %s38 = sadd.s32 %s37, 1
      %s39 = scalar_select %p36, %s37, %s38
      %p42 = pneg %p36
      %p43 = scmp.eq.s32.totalorder %s15, 1
      %p44 = por %p42, %p43
      %p45 = scmp.ne.s32.totalorder %s37, %s40
      %p46 = scmp.eq.s32.totalorder %s15, 0
      %p47 = por %p45, %p46
      %p48 = scmp.ne.s32.totalorder %s37, %s40
      %p49 = scmp.eq.s32.totalorder %s20, 1
      %p50 = por %p48, %p49
      %p51 = scmp.ne.s32.totalorder %s40, %s41
      %p52 = scmp.eq.s32.totalorder %s20, 0
      %p53 = por %p51, %p52
      %p54 = scmp.ne.s32.totalorder %s40, %s41
      %p55 = scmp.eq.s32.totalorder %s21, 1
      %p56 = por %p54, %p55
      %p58 = scmp.ne.s32.totalorder %s41, %s57
      %p59 = scmp.eq.s32.totalorder %s21, 0
      %p60 = por %p58, %p59
      %s61 = ssub.s32 %s22, %s34
      %s62 = ssub.s32 %s23, %s30
      %s63 = sor.u32 %s61, %s62
      %p64 = scmp.eq.s32.totalorder %s63, 0
      %s66 = sadd.s32 %s65, 1
      %s67 = scalar_select %p64, %s65, %s66
      %p70 = pneg %p64
      %p71 = scmp.eq.s32.totalorder %s15, 1
      %p72 = por %p70, %p71
      %p73 = scmp.ne.s32.totalorder %s65, %s68
      %p74 = scmp.eq.s32.totalorder %s15, 0
      %p75 = por %p73, %p74
      %p76 = scmp.ne.s32.totalorder %s65, %s68
      %p77 = scmp.eq.s32.totalorder %s20, 1
      %p78 = por %p76, %p77
      %p79 = scmp.ne.s32.totalorder %s68, %s69
      %p80 = scmp.eq.s32.totalorder %s20, 0
      %p81 = por %p79, %p80
      %p82 = scmp.ne.s32.totalorder %s68, %s69
      %p83 = scmp.eq.s32.totalorder %s21, 1
      %p84 = por %p82, %p83
      %p86 = scmp.ne.s32.totalorder %s69, %s85
      %p87 = scmp.eq.s32.totalorder %s21, 0
      %p88 = por %p86, %p87
      %s89 = ssub.s32 %s22, %s34
      %s90 = ssub.s32 %s23, %s30
      %s91 = sor.u32 %s89, %s90
      %p92 = scmp.eq.s32.totalorder %s91, 0
      %s94 = sadd.s32 %s93, 1
      %s95 = scalar_select %p92, %s93, %s94
      %p98 = pneg %p92
      %p99 = scmp.eq.s32.totalorder %s15, 1
      %p100 = por %p98, %p99
      %p101 = scmp.ne.s32.totalorder %s93, %s96
      %p102 = scmp.eq.s32.totalorder %s15, 0
      %p103 = por %p101, %p102
      %p104 = scmp.ne.s32.totalorder %s93, %s96
      %p105 = scmp.eq.s32.totalorder %s20, 1
      %p106 = por %p104, %p105
      %p107 = scmp.ne.s32.totalorder %s96, %s97
      %p108 = scmp.eq.s32.totalorder %s20, 0
      %p109 = por %p107, %p108
      %p110 = scmp.ne.s32.totalorder %s96, %s97
      %p111 = scmp.eq.s32.totalorder %s21, 1
      %p112 = por %p110, %p111
      %p114 = scmp.ne.s32.totalorder %s97, %s113
      %p115 = scmp.eq.s32.totalorder %s21, 0
      %p116 = por %p114, %p115
      %s118 = sadd.s32 %s117, 1
      %p121 = scmp.eq.s32.totalorder %s15, 1
      %p122 = scmp.ne.s32.totalorder %s117, %s119
      %p123 = scmp.eq.s32.totalorder %s15, 0
      %p124 = por %p122, %p123
      %p125 = scmp.ne.s32.totalorder %s117, %s119
      %p126 = scmp.eq.s32.totalorder %s20, 1
      %p127 = por %p125, %p126
      %p128 = scmp.ne.s32.totalorder %s119, %s120
      %p129 = scmp.eq.s32.totalorder %s20, 0
      %p130 = por %p128, %p129
      %p131 = scmp.ne.s32.totalorder %s119, %s120
      %p132 = scmp.eq.s32.totalorder %s21, 1
      %p133 = por %p131, %p132
      %p135 = scmp.ne.s32.totalorder %s120, %s134
      %p136 = scmp.eq.s32.totalorder %s21, 0
      %p137 = por %p135, %p136
      %s139 = sadd.s32 %s138, 1
      %p142 = scmp.eq.s32.totalorder %s15, 1
      %p143 = scmp.ne.s32.totalorder %s138, %s140
      %p144 = scmp.eq.s32.totalorder %s15, 0
      %p145 = por %p143, %p144
      %p146 = scmp.ne.s32.totalorder %s138, %s140
      %p147 = scmp.eq.s32.totalorder %s20, 1
      %p148 = por %p146, %p147
      %p149 = scmp.ne.s32.totalorder %s140, %s141
      %p150 = scmp.eq.s32.totalorder %s20, 0
      %p151 = por %p149, %p150
      %p152 = scmp.ne.s32.totalorder %s140, %s141
      %p153 = scmp.eq.s32.totalorder %s21, 1
      %p154 = por %p152, %p153
      %p156 = scmp.ne.s32.totalorder %s141, %s155
      %p157 = scmp.eq.s32.totalorder %s21, 0
      %p158 = por %p156, %p157
      %s160 = sadd.s32 %s159, 1
      %p163 = scmp.eq.s32.totalorder %s15, 1
      %p164 = scmp.ne.s32.totalorder %s159, %s161
      %p165 = scmp.eq.s32.totalorder %s15, 0
      %p166 = por %p164, %p165
      %p167 = scmp.ne.s32.totalorder %s159, %s161
      %p168 = scmp.eq.s32.totalorder %s20, 1
      %p169 = por %p167, %p168
      %p170 = scmp.ne.s32.totalorder %s161, %s162
      %p171 = scmp.eq.s32.totalorder %s20, 0
      %p172 = por %p170, %p171
      %p173 = scmp.ne.s32.totalorder %s161, %s162
      %p174 = scmp.eq.s32.totalorder %s21, 1
      %p175 = por %p173, %p174
      %p177 = scmp.ne.s32.totalorder %s162, %s176
      %p178 = scmp.eq.s32.totalorder %s21, 0
      %p179 = por %p177, %p178
      %s181 = sadd.s32 %s180, 1
      %p184 = scmp.eq.s32.totalorder %s15, 1
      %p185 = scmp.ne.s32.totalorder %s180, %s182
      %p186 = scmp.eq.s32.totalorder %s15, 0
      %p187 = por %p185, %p186
      %p188 = scmp.ne.s32.totalorder %s180, %s182
      %p189 = scmp.eq.s32.totalorder %s20, 1
      %p190 = por %p188, %p189
      %p191 = scmp.ne.s32.totalorder %s182, %s183
      %p192 = scmp.eq.s32.totalorder %s20, 0
      %p193 = por %p191, %p192
      %p194 = scmp.ne.s32.totalorder %s182, %s183
      %p195 = scmp.eq.s32.totalorder %s21, 1
      %p196 = por %p194, %p195
      %p198 = scmp.ne.s32.totalorder %s183, %s197
      %p199 = scmp.eq.s32.totalorder %s21, 0
      %p200 = por %p198, %p199
      %s201 = ssub.s32 %s22, %s34
      %p202 = scmp.eq.s32.totalorder %s201, 0
      %s204 = sadd.s32 %s203, 1
      %s205 = scalar_select %p202, %s203, %s204
      %p208 = pneg %p202
      %p209 = scmp.eq.s32.totalorder %s15, 1
      %p210 = por %p208, %p209
      %p211 = scmp.ne.s32.totalorder %s203, %s206
      %p212 = scmp.eq.s32.totalorder %s15, 0
      %p213 = por %p211, %p212
      %p214 = scmp.ne.s32.totalorder %s203, %s206
      %p215 = scmp.eq.s32.totalorder %s20, 1
      %p216 = por %p214, %p215
      %p217 = scmp.ne.s32.totalorder %s206, %s207
      %p218 = scmp.eq.s32.totalorder %s20, 0
      %p219 = por %p217, %p218
      %p220 = scmp.ne.s32.totalorder %s206, %s207
      %p221 = scmp.eq.s32.totalorder %s21, 1
      %p222 = por %p220, %p221
      %p224 = scmp.ne.s32.totalorder %s207, %s223
      %p225 = scmp.eq.s32.totalorder %s21, 0
      %p226 = por %p224, %p225
      %p227 = scmp.le.s32.totalorder 1, %s15
      %p228 = scmp.lt.s32.totalorder %s15, 3
      %p229 = pnand %p227, %p228
      %p230 = pneg %p229
      // Predicated region
      $region9: #{tpu_custom_call.1} parent=5 // pred_check
        _
      $region10: #{tpu_custom_call.1} parent=5 // pred_check_branch
        %232 = sbr.rel (%p229) target = $region12
      $region11: #{tpu_custom_call.1} parent=5 // pred_region
        %s233 = ssub.s32 %s15, 1
        // Predicated region
        $region13: #{tpu_custom_call.1} parent=11 // pred_check
          %p234 = pneg %p53
        $region14: #{tpu_custom_call.1} parent=11 // pred_check_branch
          %236 = sbr.rel (%p234) target = $region16
        $region15: #{tpu_custom_call.1} parent=11 // pred_region
          %p237 = scmp.lt.s32.totalorder %s24, 0
          %s238 = scalar_select %p237, %s24, 0
          %s239 = smul.addr %s238, 2
          %s240 = scalar_lea.vmem %s0, %s239
        $region16: #{tpu_custom_call.1} parent=11 // pred_fallthru
          _
        // Predicated region
        $region17: #{tpu_custom_call.1} parent=11 // pred_check
          %p241 = pneg %p130
        $region18: #{tpu_custom_call.1} parent=11 // pred_check_branch
          %243 = sbr.rel (%p241) target = $region20
        $region19: #{tpu_custom_call.1} parent=11 // pred_region
          _
        $region20: #{tpu_custom_call.1} parent=11 // pred_fallthru
          _
        // Predicated region
        $region21: #{tpu_custom_call.1} parent=11 // pred_check
          %p244 = pneg %p151
        $region22: #{tpu_custom_call.1} parent=11 // pred_check_branch
          %246 = sbr.rel (%p244) target = $region24
        $region23: #{tpu_custom_call.1} parent=11 // pred_region
          _
        $region24: #{tpu_custom_call.1} parent=11 // pred_fallthru
          _
        // Predicated region
        $region25: #{tpu_custom_call.1} parent=11 // pred_check
          %p247 = pneg %p172
        $region26: #{tpu_custom_call.1} parent=11 // pred_check_branch
          %249 = sbr.rel (%p247) target = $region28
        $region27: #{tpu_custom_call.1} parent=11 // pred_region
          _
        $region28: #{tpu_custom_call.1} parent=11 // pred_fallthru
          _
        // Predicated region
        $region29: #{tpu_custom_call.1} parent=11 // pred_check
          %p250 = pneg %p193
        $region30: #{tpu_custom_call.1} parent=11 // pred_check_branch
          %252 = sbr.rel (%p250) target = $region32
        $region31: #{tpu_custom_call.1} parent=11 // pred_region
          %254 = vsyncadd [#allocation7], 0
          %s256 = sshll.u32 %s6, 4
          %s257 = int_to_ptr.hbm [resolvable:$true] %s256
          %s258 = sshll.u32 [#allocation6], 4
          %s259 = int_to_ptr.vmem [resolvable:$true] %s258
          %261 = dma.hbm_to_vmem [thread:$0]  %s257, 128, %s259, [#allocation7]
        $region32: #{tpu_custom_call.1} parent=11 // pred_fallthru
          _
      $region12: #{tpu_custom_call.1} parent=5 // pred_fallthru
        _
      %p262 = scmp.lt.s32.totalorder %s15, 2
      // Predicated region
      $region33: #{tpu_custom_call.1} parent=5 // pred_check
        %p263 = pneg %p262
      $region34: #{tpu_custom_call.1} parent=5 // pred_check_branch
        %265 = sbr.rel (%p263) target = $region36
      $region35: #{tpu_custom_call.1} parent=5 // pred_region
        // Predicated region
        $region37: #{tpu_custom_call.1} parent=35 // pred_check
          %p266 = pneg %p75
        $region38: #{tpu_custom_call.1} parent=35 // pred_check_branch
          %268 = sbr.rel (%p266) target = $region40
        $region39: #{tpu_custom_call.1} parent=35 // pred_region
          %s269 = sand.u32 %s65, 1
          %s270 = sand.u32 %s65, 1
          %s271 = smul.addr %s270, 16
          %s272 = scalar_lea.vmem [#allocation4], %s271
          %s273 = smul.u32 2, %s22
          %s274 = smul.addr %s273, 2
          %s275 = sadd.s32 %s23, %s274
          %s276 = smul.addr %s275, 8
          %s277 = scalar_lea.vmem %s1, %s276
          // Predicated region
          $region41: #{tpu_custom_call.1} parent=39 // pred_check
            _
          $region42: #{tpu_custom_call.1} parent=39 // pred_check_branch
            %279 = sbr.rel (0) target = $region44
          $region43: #{tpu_custom_call.1} parent=39 // pred_region
            // Predicated region
            $region45: #{tpu_custom_call.1} parent=43 // pred_check
              _
            $region46: #{tpu_custom_call.1} parent=43 // pred_check_branch
              %281 = sbr.rel (0) target = $region48
            $region47: #{tpu_custom_call.1} parent=43 // pred_region
              // Predicated region
              $region60: #{tpu_custom_call.1} parent=47 // pred_check
                _
              $region61: #{tpu_custom_call.1} parent=47 // pred_check_branch
                %299 = sbr.rel (0) target = $region63
              $region62: #{tpu_custom_call.1} parent=47 // pred_region
                loop: start=0, step=1, limit=1
                $region64: #{tpu_custom_call.1} parent=62 // loop_pre_header
                  _
                $region65: #{tpu_custom_call.1} parent=62 // loop_header
                  %s301 = sphi 0, %s305
                  %p302 = scmp.ge.s32.totalorder %s301, 1
                  %s306 = sphi %s277, %s277
                  %s307 = sphi %s272, %s272
                $region66: #{tpu_custom_call.1} parent=62 // loop_header_branch
                  %304 = sbr.rel (%p302) target = $region70
                $region67: #{tpu_custom_call.1} parent=62 // loop_body
                  %v308 = vld [vmem:[%s306] sm:$0xff]
                  %309 = vst [vmem:[%s307] sm:$0xff] %v308
                  %v310 = vld [vmem:[%s306 + $0x10] sm:$0xff]
                  %311 = vst [vmem:[%s307 + $0x8] sm:$0xff] %v310
                $region68: #{tpu_custom_call.1} parent=62 // loop_footer
                  %s305 = sadd.s32 1, %s301
                $region69: #{tpu_custom_call.1} parent=62 // loop_footer_branch
                  %300 = sbr.rel target = $region65
                $region70: #{tpu_custom_call.1} parent=62 // loop_exit
                  _
              $region63: #{tpu_custom_call.1} parent=47 // pred_fallthru
                _
              // Predicated region
              $region71: #{tpu_custom_call.1} parent=47 // pred_check
                _
              $region72: #{tpu_custom_call.1} parent=47 // pred_check_branch
                %313 = sbr.rel target = $region74
              $region73: #{tpu_custom_call.1} parent=47 // pred_region
                _
              $region74: #{tpu_custom_call.1} parent=47 // pred_fallthru
                _
            $region48: #{tpu_custom_call.1} parent=43 // pred_fallthru
              _
            // Predicated region
            $region49: #{tpu_custom_call.1} parent=43 // pred_check
              _
            $region50: #{tpu_custom_call.1} parent=43 // pred_check_branch
              %283 = sbr.rel target = $region52
            $region51: #{tpu_custom_call.1} parent=43 // pred_region
              %s285 = ssub.s32 256, 1
              loop: start=0, step=1, limit=1
              $region53: #{tpu_custom_call.1} parent=51 // loop_pre_header
                _
              $region54: #{tpu_custom_call.1} parent=51 // loop_header
                %s287 = sphi 0, %s291
                %p288 = scmp.ge.s32.totalorder %s287, 1
                %s292 = sphi %s277, %s277
                %s293 = sphi %s272, %s272
              $region55: #{tpu_custom_call.1} parent=51 // loop_header_branch
                %290 = sbr.rel (%p288) target = $region59
              $region56: #{tpu_custom_call.1} parent=51 // loop_body
                %v294 = vld [vmem:[%s292] sm:%s285]
                %295 = vst [vmem:[%s293] sm:%s285] %v294
                %v296 = vld [vmem:[%s292 + $0x10] sm:%s285]
                %297 = vst [vmem:[%s293 + $0x8] sm:%s285] %v296
              $region57: #{tpu_custom_call.1} parent=51 // loop_footer
                %s291 = sadd.s32 1, %s287
              $region58: #{tpu_custom_call.1} parent=51 // loop_footer_branch
                %286 = sbr.rel target = $region54
              $region59: #{tpu_custom_call.1} parent=51 // loop_exit
                _
            $region52: #{tpu_custom_call.1} parent=43 // pred_fallthru
              _
          $region44: #{tpu_custom_call.1} parent=39 // pred_fallthru
            _
          %314 = vnop
        $region40: #{tpu_custom_call.1} parent=35 // pred_fallthru
          _
        // Predicated region
        $region75: #{tpu_custom_call.1} parent=35 // pred_check
          %p315 = pneg %p103
        $region76: #{tpu_custom_call.1} parent=35 // pred_check_branch
          %317 = sbr.rel (%p315) target = $region78
        $region77: #{tpu_custom_call.1} parent=35 // pred_region
          %s318 = sand.u32 %s93, 1
          %s319 = sand.u32 %s93, 1
          %s320 = smul.addr %s319, 16
          %s321 = scalar_lea.vmem [#allocation5], %s320
          %s322 = smul.u32 2, %s22
          %s323 = smul.addr %s322, 2
          %s324 = sadd.s32 %s23, %s323
          %s325 = smul.addr %s324, 8
          %s326 = scalar_lea.vmem %s2, %s325
          // Predicated region
          $region79: #{tpu_custom_call.1} parent=77 // pred_check
            _
          $region80: #{tpu_custom_call.1} parent=77 // pred_check_branch
            %328 = sbr.rel (0) target = $region82
          $region81: #{tpu_custom_call.1} parent=77 // pred_region
            // Predicated region
            $region83: #{tpu_custom_call.1} parent=81 // pred_check
              _
            $region84: #{tpu_custom_call.1} parent=81 // pred_check_branch
              %330 = sbr.rel (0) target = $region86
            $region85: #{tpu_custom_call.1} parent=81 // pred_region
              // Predicated region
              $region98: #{tpu_custom_call.1} parent=85 // pred_check
                _
              $region99: #{tpu_custom_call.1} parent=85 // pred_check_branch
                %348 = sbr.rel (0) target = $region101
              $region100: #{tpu_custom_call.1} parent=85 // pred_region
                loop: start=0, step=1, limit=1
                $region102: #{tpu_custom_call.1} parent=100 // loop_pre_header
                  _
                $region103: #{tpu_custom_call.1} parent=100 // loop_header
                  %s350 = sphi 0, %s354
                  %p351 = scmp.ge.s32.totalorder %s350, 1
                  %s355 = sphi %s326, %s326
                  %s356 = sphi %s321, %s321
                $region104: #{tpu_custom_call.1} parent=100 // loop_header_branch
                  %353 = sbr.rel (%p351) target = $region108
                $region105: #{tpu_custom_call.1} parent=100 // loop_body
                  %v357 = vld [vmem:[%s355] sm:$0xff]
                  %358 = vst [vmem:[%s356] sm:$0xff] %v357
                  %v359 = vld [vmem:[%s355 + $0x10] sm:$0xff]
                  %360 = vst [vmem:[%s356 + $0x8] sm:$0xff] %v359
                $region106: #{tpu_custom_call.1} parent=100 // loop_footer
                  %s354 = sadd.s32 1, %s350
                $region107: #{tpu_custom_call.1} parent=100 // loop_footer_branch
                  %349 = sbr.rel target = $region103
                $region108: #{tpu_custom_call.1} parent=100 // loop_exit
                  _
              $region101: #{tpu_custom_call.1} parent=85 // pred_fallthru
                _
              // Predicated region
              $region109: #{tpu_custom_call.1} parent=85 // pred_check
                _
              $region110: #{tpu_custom_call.1} parent=85 // pred_check_branch
                %362 = sbr.rel target = $region112
              $region111: #{tpu_custom_call.1} parent=85 // pred_region
                _
              $region112: #{tpu_custom_call.1} parent=85 // pred_fallthru
                _
            $region86: #{tpu_custom_call.1} parent=81 // pred_fallthru
              _
            // Predicated region
            $region87: #{tpu_custom_call.1} parent=81 // pred_check
              _
            $region88: #{tpu_custom_call.1} parent=81 // pred_check_branch
              %332 = sbr.rel target = $region90
            $region89: #{tpu_custom_call.1} parent=81 // pred_region
              %s334 = ssub.s32 256, 1
              loop: start=0, step=1, limit=1
              $region91: #{tpu_custom_call.1} parent=89 // loop_pre_header
                _
              $region92: #{tpu_custom_call.1} parent=89 // loop_header
                %s336 = sphi 0, %s340
                %p337 = scmp.ge.s32.totalorder %s336, 1
                %s341 = sphi %s326, %s326
                %s342 = sphi %s321, %s321
              $region93: #{tpu_custom_call.1} parent=89 // loop_header_branch
                %339 = sbr.rel (%p337) target = $region97
              $region94: #{tpu_custom_call.1} parent=89 // loop_body
                %v343 = vld [vmem:[%s341] sm:%s334]
                %344 = vst [vmem:[%s342] sm:%s334] %v343
                %v345 = vld [vmem:[%s341 + $0x10] sm:%s334]
                %346 = vst [vmem:[%s342 + $0x8] sm:%s334] %v345
              $region95: #{tpu_custom_call.1} parent=89 // loop_footer
                %s340 = sadd.s32 1, %s336
              $region96: #{tpu_custom_call.1} parent=89 // loop_footer_branch
                %335 = sbr.rel target = $region92
              $region97: #{tpu_custom_call.1} parent=89 // loop_exit
                _
            $region90: #{tpu_custom_call.1} parent=81 // pred_fallthru
              _
          $region82: #{tpu_custom_call.1} parent=77 // pred_fallthru
            _
          %363 = vnop
        $region78: #{tpu_custom_call.1} parent=35 // pred_fallthru
          _
      $region36: #{tpu_custom_call.1} parent=5 // pred_fallthru
        _
      %p364 = scmp.le.s32.totalorder 1, %s15
      %p365 = scmp.lt.s32.totalorder %s15, 3
      %p366 = pnand %p364, %p365
      %p367 = pneg %p366
      // Predicated region
      $region113: #{tpu_custom_call.1} parent=5 // pred_check
        _
      $region114: #{tpu_custom_call.1} parent=5 // pred_check_branch
        %369 = sbr.rel (%p366) target = $region116
      $region115: #{tpu_custom_call.1} parent=5 // pred_region
        %s370 = ssub.s32 %s15, 1
        %s371 = sand.u32 %s68, 1
        %s372 = sand.u32 %s68, 1
        %s373 = smul.addr %s372, 16
        %s374 = scalar_lea.vmem [#allocation4], %s373
        // Predicated region
        $region117: #{tpu_custom_call.1} parent=115 // pred_check
          %p375 = pneg %p81
        $region118: #{tpu_custom_call.1} parent=115 // pred_check_branch
          %377 = sbr.rel (%p375) target = $region120
        $region119: #{tpu_custom_call.1} parent=115 // pred_region
          _
        $region120: #{tpu_custom_call.1} parent=115 // pred_fallthru
          _
        %s378 = sand.u32 %s96, 1
        %s379 = sand.u32 %s96, 1
        %s380 = smul.addr %s379, 16
        %s381 = scalar_lea.vmem [#allocation5], %s380
        // Predicated region
        $region121: #{tpu_custom_call.1} parent=115 // pred_check
          %p382 = pneg %p109
        $region122: #{tpu_custom_call.1} parent=115 // pred_check_branch
          %384 = sbr.rel (%p382) target = $region124
        $region123: #{tpu_custom_call.1} parent=115 // pred_region
          _
        $region124: #{tpu_custom_call.1} parent=115 // pred_fallthru
          _
        // Predicated region
        $region125: #{tpu_custom_call.1} parent=115 // pred_check
          %p385 = pneg %p193
        $region126: #{tpu_custom_call.1} parent=115 // pred_check_branch
          %387 = sbr.rel (%p385) target = $region128
        $region127: #{tpu_custom_call.1} parent=115 // pred_region
          %389 = dma.done [#allocation7], 128
        $region128: #{tpu_custom_call.1} parent=115 // pred_fallthru
          _
        %p390 = scmp.lt.s32.totalorder %s24, 0
        %s391 = scalar_select %p390, %s24, 0
        %s392 = smul.addr %s391, 2
        %s393 = scalar_lea.vmem %s0, %s392
        %p394 = pneg %p53
        %p395 = pneg %p50
        %s396 = sand.u32 %s68, 1
        %s397 = sand.u32 %s68, 1
        %s398 = smul.addr %s397, 16
        %s399 = scalar_lea.vmem [#allocation4], %s398
        %p400 = pneg %p81
        %p401 = pneg %p78
        %s402 = sand.u32 %s96, 1
        %s403 = sand.u32 %s96, 1
        %s404 = smul.addr %s403, 16
        %s405 = scalar_lea.vmem [#allocation5], %s404
        %p406 = pneg %p109
        %p407 = pneg %p106
        %p408 = pneg %p130
        %p409 = pneg %p127
        %p410 = pneg %p151
        %p411 = pneg %p148
        %p412 = pneg %p172
        %p413 = pneg %p169
        %p414 = pneg %p193
        %p415 = pneg %p190
        %p416 = pneg %p219
        %p417 = pneg %p216
        %p418 = scmp.lt.s32.totalorder %s24, 0
        %s419 = scalar_select %p418, %s24, 0
        %s420 = smul.addr %s419, 2
        %s421 = scalar_lea.vmem %s0, %s420
        %s422 = smul.u32 2, %s24
        %s423 = smul.u32 2, %s24
        %p424 = scmp.eq.s32.totalorder %s25, 0
        // Predicated region
        $region129: #{tpu_custom_call.1} parent=115 // pred_check
          %p425 = pneg %p424
        $region130: #{tpu_custom_call.1} parent=115 // pred_check_branch
          %427 = sbr.rel (%p425) target = $region132
        $region131: #{tpu_custom_call.1} parent=115 // pred_region
          %vm428 = vcmask 517120
          %429 = vst.msk [vmem:[#allocation2] sm:$0x3] %vm428, 0.0
          %vm430 = vcmask 1024
          %431 = vst.msk [vmem:[#allocation3] sm:$0x3] %vm430, 0.0
        $region132: #{tpu_custom_call.1} parent=115 // pred_fallthru
          _
        %v432 = vld [vmem:[%s374] sm:$0xff]
        %v433 = vld [vmem:[%s374 + $0x8] sm:$0xff]
        %v434 = vld [vmem:[%s3] sm:$0xff]
        %v435 = vld [vmem:[%s3 + $0x8] sm:$0xff]
        %v436 = vld [vmem:[%s3 + $0x10] sm:$0xff]
        %v437 = vld [vmem:[%s3 + $0x18] sm:$0xff]
        %v438 = vld [vmem:[#allocation6] sm:$0x1]
        %v439 = vperm.slane %v438, 0
        %vm440 = vcmask 261120
        %v442 = vsel %vm440, %v432, 0
        %v445 = vsel %vm440, %v433, 0
        %447 = vmatpush.msra.mxu0 0.0
        %448 = vmatpush.msra.mxu0 0.0
        %449 = vmatpush.msra.mxu0 0.0
        %450 = vmatpush.msra.mxu0 0.0
        %451 = vmatpush.msra.mxu0 0.0
        %452 = vmatpush.msra.mxu0 0.0
        %453 = vmatpush.msra.mxu0 0.0
        %454 = vmatpush.msra.mxu0 0.0
        %455 = vmatpush.msra.mxu0 0.0
        %456 = vmatpush.msra.mxu0 0.0
        %457 = vmatpush.msra.mxu0 0.0
        %458 = vmatpush.msra.mxu0 0.0
        %459 = vmatpush.msra.mxu0 %v437
        %460 = vmatpush.msra.mxu0 %v436
        %461 = vmatpush.msra.mxu0 %v435
        %462 = vmatpush.msra.mxu0 %v434
        %463 = vmatmul.f32.gmra.mxu0 %v442
        %v464 = vpop.f32.mrf.mxu0
        %v465 = vadd.f32 %v439, %v464
        %466 = vmatmul.f32.gmra.mxu0 %v445
        %v467 = vpop.f32.mrf.mxu0
        %v468 = vadd.f32 %v439, %v467
        %469 = vdwg.mxu0
        %v470 = vmax.f32 %v465, 0.0
        %v471 = vmax.f32 %v468, 0.0
        %v472 = vld [vmem:[%s381] sm:$0xff]
        %v473 = vld [vmem:[%s381 + $0x8] sm:$0xff]
        %v474 = vld [vmem:[#allocation2] sm:$0x3]
        %476 = vset.pattern.permute.xlu0 0
        %477 = vperm.xlu0 %476, %v472
        %v478 = vpop.permute.xlu0 %477
        %481 = vset.pattern.permute.xlu0 0
        %482 = vperm.xlu0 %481, %v473
        %v483 = vpop.permute.xlu0 %482
        %v485 = vmul.f32 %v470, %v478
        %v486 = vmul.f32 %v471, %v483
        %vm487 = vcmask 523264
        %v488 = vsel %vm487, %v485, 0.0
        %v489 = vrot.slane %v488, 4
        %v490 = vadd.f32 %v488, %v489
        %v491 = vrot.slane %v490, 2
        %v492 = vadd.f32 %v490, %v491
        %v493 = vrot.slane %v492, 1
        %v494 = vadd.f32 %v492, %v493
        %v495 = vsel %vm487, %v486, 0.0
        %v496 = vrot.slane %v495, 4
        %v497 = vadd.f32 %v495, %v496
        %v498 = vrot.slane %v497, 2
        %v499 = vadd.f32 %v497, %v498
        %v500 = vrot.slane %v499, 1
        %v501 = vadd.f32 %v499, %v500
        %vm504 = vcmask 1041409
        %v505 = vsel %vm504, %v501, %v494
        %v507 = vadd.f32 %v474, %v505
        %vm508 = vcmask 517120
        %509 = vst.msk [vmem:[#allocation2] sm:$0x3] %vm508, %v507
        %v510 = vld [vmem:[#allocation3] sm:$0x3]
        %vm511 = vcmask 7168
        %v512 = vsel %vm511, %v472, 0.0
        %v513 = vrot.slane %v512, 4
        %v514 = vadd.f32 %v512, %v513
        %v515 = vrot.slane %v514, 2
        %v516 = vadd.f32 %v514, %v515
        %v517 = vrot.slane %v516, 1
        %v518 = vadd.f32 %v516, %v517
        %v519 = vsel %vm511, %v473, 0.0
        %v520 = vrot.slane %v519, 4
        %v521 = vadd.f32 %v519, %v520
        %v522 = vrot.slane %v521, 2
        %v523 = vadd.f32 %v521, %v522
        %v524 = vrot.slane %v523, 1
        %v525 = vadd.f32 %v523, %v524
        %v528 = vsel %vm504, %v525, %v518
        %v530 = vadd.f32 %v510, %v528
        %vm531 = vcmask 1024
        %532 = vst.msk [vmem:[#allocation3] sm:$0x3] %vm531, %v530
        %p533 = scmp.eq.s32.totalorder %s25, 1
        // Predicated region
        $region133: #{tpu_custom_call.1} parent=115 // pred_check
          %p534 = pneg %p533
        $region134: #{tpu_custom_call.1} parent=115 // pred_check_branch
          %536 = sbr.rel (%p534) target = $region136
        $region135: #{tpu_custom_call.1} parent=115 // pred_region
          %v537 = vld [vmem:[%s421] sm:$0x3]
          %v538 = vld [vmem:[#allocation6 + $0x1] sm:$0x1]
          %v539 = vld [vmem:[#allocation6 + $0x2] sm:$0x1]
          %v540 = vld [vmem:[#allocation6 + $0x3] sm:$0x1]
          %v541 = vld [vmem:[#allocation6 + $0x4] sm:$0x1]
          %v542 = vld [vmem:[%s5] sm:$0xff]
          %v543 = vld [vmem:[%s5 + $0x8] sm:$0xff]
          %v544 = vld [vmem:[%s5 + $0x10] sm:$0xff]
          %v545 = vld [vmem:[%s5 + $0x18] sm:$0xff]
          %v546 = vperm.slane %v538, 0
          %v548 = vsel %vm440, %v537, 0
          %550 = vmatpush.msra.mxu0 0.0
          %551 = vmatpush.msra.mxu0 0.0
          %552 = vmatpush.msra.mxu0 0.0
          %553 = vmatpush.msra.mxu0 0.0
          %554 = vmatpush.msra.mxu0 0.0
          %555 = vmatpush.msra.mxu0 0.0
          %556 = vmatpush.msra.mxu0 0.0
          %557 = vmatpush.msra.mxu0 0.0
          %558 = vmatpush.msra.mxu0 0.0
          %559 = vmatpush.msra.mxu0 0.0
          %560 = vmatpush.msra.mxu0 0.0
          %561 = vmatpush.msra.mxu0 0.0
          %562 = vmatpush.msra.mxu0 %v545
          %563 = vmatpush.msra.mxu0 %v544
          %564 = vmatpush.msra.mxu0 %v543
          %565 = vmatpush.msra.mxu0 %v542
          %566 = vmatmul.f32.gmra.mxu0 %v548
          %v567 = vpop.f32.mrf.mxu0
          %v568 = vadd.f32 %v546, %v567
          %569 = vdwg.mxu0
          %v570 = vmax.f32 %v568, 0.0
          %v571 = vld [vmem:[#allocation3] sm:$0x3]
          %v572 = vmax.f32 %v571, 1e-06
          %v573 = vrcp.pop %v572
          %v574 = vmul.f32 %v572, %v573
          %v575 = vsub.f32 1.0, %v574
          %v576 = vmul.f32 %v573, %v575
          %v577 = vadd.f32 %v573, %v576
          %vm578 = vweird.f32 %v572
          %vm579 = vweird.f32 %v573
          %vm580 = vmor %vm578, %vm579
          %v581 = vsel %vm580, %v573, %v577
          %v582 = vand.u32 2147483647, %v572
          %vm583 = vcmp.eq.f32.partialorder %v582, 8.507059e+37
          %v584 = vand.u32 %v572, 2147483648
          %v585 = vor.u32 1.1754944e-38, %v584
          %v586 = vsel %vm583, %v585, %v581
          %v587 = vmul.f32 1.0, %v586
          %v588 = vld [vmem:[#allocation2] sm:$0x3]
          %v589 = vld [vmem:[%s4] sm:$0xff]
          %v590 = vld [vmem:[%s4 + $0x8] sm:$0xff]
          %v591 = vld [vmem:[%s4 + $0x10] sm:$0xff]
          %v592 = vld [vmem:[%s4 + $0x18] sm:$0xff]
          %v593 = vld [vmem:[%s4 + $0x20] sm:$0xff]
          %v594 = vld [vmem:[%s4 + $0x28] sm:$0xff]
          %v595 = vld [vmem:[%s4 + $0x30] sm:$0xff]
          %v596 = vld [vmem:[%s4 + $0x38] sm:$0xff]
          %v598 = vsel %vm487, %v588, 0
          %600 = vmatpush.msra.mxu0 0.0
          %601 = vmatpush.msra.mxu0 0.0
          %602 = vmatpush.msra.mxu0 0.0
          %603 = vmatpush.msra.mxu0 0.0
          %604 = vmatpush.msra.mxu0 0.0
          %605 = vmatpush.msra.mxu0 0.0
          %606 = vmatpush.msra.mxu0 0.0
          %607 = vmatpush.msra.mxu0 0.0
          %608 = vmatpush.msra.mxu0 %v596
          %609 = vmatpush.msra.mxu0 %v595
          %610 = vmatpush.msra.mxu0 %v594
          %611 = vmatpush.msra.mxu0 %v593
          %612 = vmatpush.msra.mxu0 %v592
          %613 = vmatpush.msra.mxu0 %v591
          %614 = vmatpush.msra.mxu0 %v590
          %615 = vmatpush.msra.mxu0 %v589
          %616 = vmatmul.f32.gmra.mxu0 %v598
          %v617 = vpop.f32.mrf.mxu0
          %v618 = vadd.f32 0.0, %v617
          %619 = vdwg.mxu0
          %621 = vset.pattern.permute.xlu0 0
          %622 = vperm.xlu0 %621, %v587
          %v623 = vpop.permute.xlu0 %622
          %v625 = vmul.f32 %v618, %v623
          %v626 = vperm.slane %v539, 0
          %v627 = vadd.f32 %v625, %v626
          %v628 = vadd.f32 %v537, %v570
          %v629 = vadd.f32 %v628, %v627
          %vm630 = vcmask 254976
          %v631 = vsel %vm630, %v629, 0.0
          %632 = vadd.xlane.f32.xlu0 %v631
          %v633 = vpop.xlane.xlu0 %632
          %v634 = vrcp.pop 32.0
          %v635 = vmul.f32 32.0, %v634
          %v636 = vsub.f32 1.0, %v635
          %v637 = vmul.f32 %v634, %v636
          %v638 = vadd.f32 %v634, %v637
          %vm639 = vweird.f32 %v634
          %v640 = vsel %vm639, %v634, %v638
          %v641 = vmul.f32 %v633, %v640
          %v642 = vsub.f32 %v629, %v641
          %v643 = vmul.f32 %v642, %v642
          %v644 = vsel %vm630, %v643, 0.0
          %645 = vadd.xlane.f32.xlu0 %v644
          %v646 = vpop.xlane.xlu0 %645
          %v647 = vmul.f32 %v646, %v640
          %v648 = vadd.f32 %v647, 1e-05
          %v649 = vrsqrt.pop %v648
          %v650 = vmul.f32 %v649, %v648
          %v651 = vmul.f32 %v650, %v649
          %v652 = vmul.f32 0.5, %v651
          %v653 = vsub.f32 1.5, %v652
          %v654 = vmul.f32 %v649, %v653
          %vm655 = vweird.f32 %v648
          %vm656 = vweird.f32 %v649
          %vm657 = vmor %vm655, %vm656
          %v658 = vsel %vm657, %v649, %v654
          %v659 = vmul.f32 %v642, %v658
          %v660 = vperm.slane %v540, 0
          %v661 = vmul.f32 %v659, %v660
          %v662 = vperm.slane %v541, 0
          %v663 = vadd.f32 %v661, %v662
          %664 = vst.msk [vmem:[#allocation9] sm:$0x3] %vm630, %v663
        $region136: #{tpu_custom_call.1} parent=115 // pred_fallthru
          _
        // Predicated region
        $region137: #{tpu_custom_call.1} parent=115 // pred_check
          %p665 = pneg %p216
        $region138: #{tpu_custom_call.1} parent=115 // pred_check_branch
          %667 = sbr.rel (%p665) target = $region140
        $region139: #{tpu_custom_call.1} parent=115 // pred_region
          %669 = vsyncadd [#allocation8], 0
          %s670 = smul.addr %s24, 2
          %s671 = scalar_lea.hbm %s7, %s670
          %s673 = sshll.u32 [#allocation9], 4
          %s674 = int_to_ptr.vmem [resolvable:$true] %s673
          %s675 = sshll.u32 %s671, 4
          %s676 = int_to_ptr.hbm [resolvable:$true] %s675
          %678 = dma.vmem_to_hbm [thread:$0]  %s674, 32, %s676, [#allocation8]
        $region140: #{tpu_custom_call.1} parent=115 // pred_fallthru
          _
        // Predicated region
        $region141: #{tpu_custom_call.1} parent=115 // pred_check
          %p679 = pneg %p216
        $region142: #{tpu_custom_call.1} parent=115 // pred_check_branch
          %681 = sbr.rel (%p679) target = $region144
        $region143: #{tpu_custom_call.1} parent=115 // pred_region
          %683 = dma.done [#allocation8], 32
        $region144: #{tpu_custom_call.1} parent=115 // pred_fallthru
          _
      $region116: #{tpu_custom_call.1} parent=5 // pred_fallthru
        _
      %p684 = scmp.le.s32.totalorder 2, %s15
      // Predicated region
      $region145: #{tpu_custom_call.1} parent=5 // pred_check
        %p685 = pneg %p684
      $region146: #{tpu_custom_call.1} parent=5 // pred_check_branch
        %687 = sbr.rel (%p685) target = $region148
      $region147: #{tpu_custom_call.1} parent=5 // pred_region
        %s688 = ssub.s32 %s15, 2
      $region148: #{tpu_custom_call.1} parent=5 // pred_fallthru
        _
    $region6: #{tpu_custom_call.1} parent=1 // loop_footer
      %s19 = sadd.s32 1, %s15
    $region7: #{tpu_custom_call.1} parent=1 // loop_footer_branch
      %14 = sbr.rel target = $region3
    $region8: #{tpu_custom_call.1} parent=1 // loop_exit
      _
    %689 = vsyncpa [#allocation7], 1
    %s690 = scalar_lea.sflag [#allocation7], 1
    %691 = vsyncpa %s690, 1
    %692 = vsyncpa [#allocation8], 1
    %s693 = scalar_lea.sflag [#allocation8], 1
    %694 = vsyncpa %s693, 1

</llo_original>
